<compile_context>
chip_gen: v5e
topology: v5e:2x2
jax: 0.10.0
libtpu: 0.0.40
codegen_flags: <defaults>
</compile_context>

<pallas_src>
import functools

import jax
import jax.numpy as jnp
from jax import lax
from jax.experimental import pallas as pl
from jax.experimental.pallas import tpu as pltpu

EMBED_DIMENSION = 300
EMBED_MAX_NORM = 1.0


def _round_up(x: int, m: int) -> int:
    return ((x + m - 1) // m) * m


# --------------------------------------------------------------------------------------
# Kernel A: gather the B*C embedding rows, renorm, accumulate the per-batch context mean.
#   grid = (B, C), both "arbitrary" (output accumulator stays resident across the grid).
#   idx_ref : (B*C,)     int32 SMEM (scalar prefetch; consumed by the index_map)
#   emb_ref : (1, 1, Dp) f32   -- one gathered embedding row
#   mean_ref: (Bp, Dp)   f32   -- resident accumulator output
# --------------------------------------------------------------------------------------
def gather_mean_kernel(idx_ref, emb_ref, mean_ref, *, context_len, batch_pad):
    del idx_ref  # only used by the index_map
    b = pl.program_id(0)
    c = pl.program_id(1)

    @pl.when((b == 0) & (c == 0))
    def _init():
        mean_ref[...] = jnp.zeros_like(mean_ref)

    row = emb_ref[0]                                            # (1, Dp)
    nrm = jnp.sqrt(jnp.sum(row * row))
    # Same epsilon/formula as torch's embedding_renorm_ (and the JAX reference below).
    scale = jnp.where(nrm > EMBED_MAX_NORM, EMBED_MAX_NORM / (nrm + 1e-7), 1.0)
    contrib = row * (scale * (1.0 / context_len))               # (1, Dp)

    # One-hot accumulate into batch row b — fully vectorized, no dynamic-index store.
    onehot = (lax.broadcasted_iota(jnp.int32, (batch_pad, 1), 0) == b).astype(jnp.float32)
    mean_ref[...] += onehot * contrib


# --------------------------------------------------------------------------------------
# Kernel B: linear layer, tiled over the output vocabulary ("parallel").
#   mean_ref: (Bp, Dp)     f32 (same block every step)
#   w_ref   : (tile_v, Dp) f32 -- native (V, D) layout, contraction on D (no transpose)
#   b_ref   : (1, tile_v)  f32
#   out_ref : (Bp, tile_v) f32 lane-dense output tile
# --------------------------------------------------------------------------------------
def linear_kernel(mean_ref, w_ref, b_ref, out_ref):
    out_ref[...] = (
        lax.dot_general(
            mean_ref[...], w_ref[...],
            dimension_numbers=(((1,), (1,)), ((), ())),
            preferred_element_type=jnp.float32,
        )
        + b_ref[...]
    )


def prepare_cbow_params(emb_table, linear_w, linear_b, *, tile_v=4096):
    """Pad/reshape parameters ONCE (hoisted out of the per-forward path)."""
    V, D = emb_table.shape
    tv = min(tile_v, _round_up(V, 128))          # multiple of 128
    Vp = _round_up(V, tv)
    Dp = _round_up(D, 128)

    emb_p = jnp.zeros((Vp, Dp), jnp.float32).at[:V, :D].set(emb_table.astype(jnp.float32))
    emb_p3 = emb_p.reshape(Vp, 1, Dp)            # (1,1,Dp) row blocks satisfy (8,128) rule
    w_p = jnp.zeros((Vp, Dp), jnp.float32).at[:V, :D].set(linear_w.astype(jnp.float32))
    b_p = jnp.zeros((1, Vp), jnp.float32).at[0, :V].set(linear_b.astype(jnp.float32))
    return dict(emb=emb_p3, w=w_p, b=b_p, V=V, D=D, Vp=Vp, Dp=Dp, tv=tv)


def cbow_forward(indices, params):
    """indices: (B, C) int32; params from prepare_cbow_params()."""
    B, C = indices.shape
    V, Vp, Dp, tv = params["V"], params["Vp"], params["Dp"], params["tv"]
    Bp = _round_up(B, 8)
    n_vtiles = Vp // tv

    idx_flat = jnp.clip(indices.reshape(-1).astype(jnp.int32), 0, V - 1)   # (B*C,)

    # --- Kernel A: gather + renorm + context mean (only B*C rows of the table move) ---
    mean = pl.pallas_call(
        functools.partial(gather_mean_kernel, context_len=C, batch_pad=Bp),
        out_shape=jax.ShapeDtypeStruct((Bp, Dp), jnp.float32),
        grid_spec=pltpu.PrefetchScalarGridSpec(
            num_scalar_prefetch=1,
            grid=(B, C),
            in_specs=[
                # One embedding row per grid step, selected by the prefetched indices.
                pl.BlockSpec((1, 1, Dp), lambda b, c, idx: (idx[b * C + c], 0, 0)),
            ],
            out_specs=pl.BlockSpec((Bp, Dp), lambda b, c, idx: (0, 0)),
        ),
        compiler_params=pltpu.CompilerParams(
            dimension_semantics=("arbitrary", "arbitrary")),
    )(idx_flat, params["emb"])

    # --- Kernel B: logits, tiled over output vocab ("parallel" for megacore) ----------
    # VMEM budget: double-buffered W tile + output tile + resident mean + bias + slack.
    vmem_limit = int(min(
        2 * tv * Dp * 4 + 2 * Bp * tv * 4 + 2 * Bp * Dp * 4 + 2 * tv * 4 + (4 << 20),
        48 << 20))   # leave headroom on v7x's 64 MiB physical VMEM
    out_p = pl.pallas_call(
        linear_kernel,
        out_shape=jax.ShapeDtypeStruct((Bp, Vp), jnp.float32),
        grid_spec=pltpu.PrefetchScalarGridSpec(
            num_scalar_prefetch=0,
            grid=(n_vtiles,),
            in_specs=[
                pl.BlockSpec((Bp, Dp), lambda j: (0, 0)),     # mean embeddings
                pl.BlockSpec((tv, Dp), lambda j: (j, 0)),     # W tile, native (V, D)
                pl.BlockSpec((1, tv), lambda j: (0, j)),      # bias tile
            ],
            out_specs=pl.BlockSpec((Bp, tv), lambda j: (0, j)),
        ),
        compiler_params=pltpu.CompilerParams(
            dimension_semantics=("parallel",),
            vmem_limit_bytes=vmem_limit,
        ),
    )(mean, params["w"], params["b"])

    return out_p[:B, :V]


def cbow_reference(indices, emb_table, linear_w, linear_b):
    """Pure-JAX reference mirroring the PyTorch semantics."""
    rows = emb_table[indices]                                        # (B, C, D)
    nrm = jnp.sqrt(jnp.sum(rows * rows, axis=-1, keepdims=True))
    scale = jnp.where(nrm > EMBED_MAX_NORM, EMBED_MAX_NORM / (nrm + 1e-7), 1.0)
    x = (rows * scale).mean(axis=1)                                  # (B, D)
    return x @ linear_w.T + linear_b                                 # (B, V)


if __name__ == "__main__":
    VOCAB = 50
    EMBED_DIM = EMBED_DIMENSION   # 300
    BATCH = 8
    CONTEXT = 6

    key = jax.random.PRNGKey(0)
    k_idx, k_emb, k_w, k_b = jax.random.split(key, 4)

    indices = jax.random.randint(k_idx, (BATCH, CONTEXT), 0, VOCAB, dtype=jnp.int32)
    emb_table = jax.random.normal(k_emb, (VOCAB, EMBED_DIM), dtype=jnp.float32)
    # nn.Linear default init range ~ U(-1/sqrt(D), 1/sqrt(D))
    bound = 1.0 / (EMBED_DIM ** 0.5)
    linear_w = jax.random.uniform(k_w, (VOCAB, EMBED_DIM), jnp.float32, -bound, bound)
    linear_b = jax.random.uniform(k_b, (VOCAB,), jnp.float32, -bound, bound)

    params = prepare_cbow_params(emb_table, linear_w, linear_b)   # padded once, reused
    out = cbow_forward(indices, params)
    out = jax.block_until_ready(out)

    ref = cbow_reference(indices, emb_table, linear_w, linear_b)
    assert out.shape == (BATCH, VOCAB)
    assert jnp.allclose(out, ref, rtol=1e-4, atol=1e-4), "mismatch vs reference"

    print("KERNEL_OK")
</pallas_src>

<mosaic_0001>
module attributes {stable_mosaic.version = 11 : i64} {
  func.func @gather_mean_kernel(%arg0: i32, %arg1: i32, %arg2: memref<48xi32, #tpu.memory_space<smem>>, %arg3: memref<1x1x384xf32, #tpu.memory_space<vmem>>, %arg4: memref<8x384xf32, #tpu.memory_space<vmem>>) attributes {dimension_semantics = [#tpu.dimension_semantics<arbitrary>, #tpu.dimension_semantics<arbitrary>], iteration_bounds = array<i64: 8, 6>, scalar_prefetch = 1 : i64, scratch_operands = 0 : i64, tpu.core_type = #tpu.core_type<tc>, window_params = [{transform_indices = @transform_0, window_bounds = array<i64: 1, 1, 384>}, {pipeline_mode = #tpu.pipeline_mode<synchronous>, transform_indices = @transform_1, window_bounds = array<i64: 8, 384>}]} {
    %c0_i32 = arith.constant 0 : i32
    %0 = arith.cmpi eq, %arg0, %c0_i32 : i32
    %c0_i32_0 = arith.constant 0 : i32
    %1 = arith.cmpi eq, %arg1, %c0_i32_0 : i32
    %2 = arith.andi %0, %1 : i1
    %3 = arith.extui %2 : i1 to i32
    %c0_i32_1 = arith.constant 0 : i32
    %4 = arith.cmpi ne, %3, %c0_i32_1 : i32
    scf.if %4 {
      %cst_13 = arith.constant 0.000000e+00 : f32
      %31 = vector.broadcast %cst_13 : f32 to vector<8x384xf32>
      %c0_14 = arith.constant 0 : index
      %c0_15 = arith.constant 0 : index
      %32 = vector.load %arg4[%c0_14, %c0_15] : memref<8x384xf32, #tpu.memory_space<vmem>>, vector<8x384xf32>
      tpu.vector_store %arg4[%c0_14, %c0_15], %31 {strides = array<i32>} : memref<8x384xf32, #tpu.memory_space<vmem>>, vector<8x384xf32>,
    } else {
    }
    %c0 = arith.constant 0 : index
    %c0_2 = arith.constant 0 : index
    %c0_3 = arith.constant 0 : index
    %5 = vector.load %arg3[%c0, %c0_2, %c0_3] : memref<1x1x384xf32, #tpu.memory_space<vmem>>, vector<1x1x384xf32>
    %6 = vector.shape_cast %5 : vector<1x1x384xf32> to vector<1x384xf32>
    %7 = arith.mulf %6, %6 : vector<1x384xf32>
    %8 = vector.shape_cast %7 : vector<1x384xf32> to vector<1x1x384xf32>
    %cst = arith.constant dense<0.000000e+00> : vector<1xf32>
    %9 = vector.multi_reduction <add>, %8, %cst [1, 2] : vector<1x1x384xf32> to vector<1xf32>
    %10 = vector.shape_cast %9 : vector<1xf32> to vector<1x1x1xf32>
    %11 = vector.extract %10[0, 0, 0] : f32 from vector<1x1x1xf32>
    %12 = math.sqrt %11 : f32
    %cst_4 = arith.constant 1.000000e+00 : f32
    %13 = arith.cmpf ogt, %12, %cst_4 : f32
    %cst_5 = arith.constant 1.000000e-07 : f32
    %14 = arith.addf %12, %cst_5 : f32
    %cst_6 = arith.constant 1.000000e+00 : f32
    %15 = arith.divf %cst_6, %14 : f32
    %cst_7 = arith.constant 1.000000e+00 : f32
    %16 = arith.select %13, %15, %cst_7 : f32
    %cst_8 = arith.constant 0.166666672 : f32
    %17 = arith.mulf %16, %cst_8 : f32
    %18 = vector.broadcast %17 : f32 to vector<1x384xf32>
    %19 = arith.mulf %6, %18 : vector<1x384xf32>
    %20 = tpu.iota {dimensions = array<i32: 0>} : vector<8x1xi32>
    %21 = vector.broadcast %arg0 : i32 to vector<8x1xi32>
    %22 = arith.cmpi eq, %20, %21 : vector<8x1xi32>
    %23 = arith.extui %22 : vector<8x1xi1> to vector<8x1xi32>
    %24 = arith.sitofp %23 : vector<8x1xi32> to vector<8x1xf32>
    %c0_9 = arith.constant 0 : index
    %c0_10 = arith.constant 0 : index
    %25 = vector.load %arg4[%c0_9, %c0_10] : memref<8x384xf32, #tpu.memory_space<vmem>>, vector<8x384xf32>
    %26 = vector.broadcast %24 : vector<8x1xf32> to vector<8x384xf32>
    %27 = vector.broadcast %19 : vector<1x384xf32> to vector<8x384xf32>
    %28 = arith.mulf %26, %27 : vector<8x384xf32>
    %29 = arith.addf %25, %28 : vector<8x384xf32>
    %c0_11 = arith.constant 0 : index
    %c0_12 = arith.constant 0 : index
    %30 = vector.load %arg4[%c0_11, %c0_12] : memref<8x384xf32, #tpu.memory_space<vmem>>, vector<8x384xf32>
    tpu.vector_store %arg4[%c0_11, %c0_12], %29 {strides = array<i32>} : memref<8x384xf32, #tpu.memory_space<vmem>>, vector<8x384xf32>,
    return
  }
  func.func @transform_0(%arg0: i32, %arg1: i32, %arg2: memref<48xi32, #tpu.memory_space<smem>>) -> (i32, i32, i32) {
    %c6_i32 = arith.constant 6 : i32
    %0 = arith.muli %arg0, %c6_i32 : i32
    %1 = arith.addi %0, %arg1 : i32
    %2 = arith.index_cast %1 : i32 to index
    %3 = memref.load %arg2[%2] : memref<48xi32, #tpu.memory_space<smem>>
    %c0_i32 = arith.constant 0 : i32
    %c0_i32_0 = arith.constant 0 : i32
    %c0_i32_1 = arith.constant 0 : i32
    return %3, %c0_i32, %c0_i32_0 : i32, i32, i32
  }
  func.func @transform_1(%arg0: i32, %arg1: i32, %arg2: memref<48xi32, #tpu.memory_space<smem>>) -> (i32, i32) {
    %c0_i32 = arith.constant 0 : i32
    %c0_i32_0 = arith.constant 0 : i32
    %c0_i32_1 = arith.constant 0 : i32
    return %c0_i32, %c0_i32_0 : i32, i32
  }
}

</mosaic_0001>

<llo_original>
// kernel: tpu_custom_call.1
$region0: #{tpu_custom_call.1}
  #allocation0 [shape = 'u32[]', space=smem, size = 0x4, offset = 0x4, fixed_abs, tag = 'smem constant byte address 0x4 - core index']
  #allocation1 [shape = 'u32[72,128]{1,0:T(1,128)}', space=vmem, size = 0x9000, scoped, tag = 'internal scratch']
  #allocation2 [shape = 's32[1]{0}', space=sflag, size = 0x4, scoped, tag = 'scoped memory for tpu_custom_call.1']
  #allocation3 [shape = 'u8[512]{0}', space=smem, size = 0x200, scoped, tag = 'prefetched SMEM operand 0']
  %s0 = inlined_call_operand.hbm [shape: s32[48], index: 0, kind: input, shape index: {}]
  %s1 = inlined_call_operand.hbm [shape: f32[128,1,384], index: 1, kind: input, shape index: {}]
  %s2 = inlined_call_operand.hbm [shape: f32[8,384], index: 2, kind: output, shape index: {}]
  %s3 = sld [smem:[#allocation0]]
  $region45: #{tpu_custom_call.1} parent=0
    _
  %s5 = ssub.s32 1, %s3
  %s6 = scalar_select 0, %s5, %s3
  %s8 = sshll.u32 %s0, 4
  %s9 = int_to_ptr.hbm [resolvable:$true] %s8
  %11 = dma.hbm_to_smem %s9, 16, [#allocation3], [#allocation2]
  %13 = dma.done [#allocation2], 16
  %14 = sfence
  $region1: #{tpu_custom_call.1} parent=0
    #allocation4 [shape = 'u8[3072]{0}', space=vmem, size = 0xc00, scoped, tag = 'input window, operand 1']
    #allocation5 [shape = 's32[2]{0}', space=sflag, size = 0x8, scoped, tag = 'scoped memory for tpu_custom_call.1']
    #allocation6 [shape = 's32[2]{0}', space=sflag, size = 0x8, scoped, tag = 'scoped memory for tpu_custom_call.1']
    #allocation7 [shape = 'u8[12288]{0}', space=vmem, size = 0x3000, scoped, tag = 'output window, operand 0, single buffered']
    %15 = vsyncpa [#allocation5], 0
    %s16 = scalar_lea.sflag [#allocation5], 1
    %17 = vsyncpa %s16, 0
    %18 = vsyncpa [#allocation6], 0
    loop: start=0, step=1, limit=50
    $region2: #{tpu_custom_call.1} parent=1 // loop_pre_header
      _
    $region3: #{tpu_custom_call.1} parent=1 // loop_header
      %s20 = sphi 0, %s24
      %p21 = scmp.ge.s32.totalorder %s20, 50
      %s27 = sphi 0, %s39
      %s28 = sphi 0, %s35
      %s29 = sphi 0, %s27
      %s30 = sphi 0, %s28
      %s31 = sphi 0, %s29
      %s32 = sphi 0, %s30
      %s48 = sphi 0, %s50
      %s51 = sphi 0, %s48
      %s52 = sphi 0, %s51
      %s68 = sphi 0, %s52
      %s72 = sphi 0, %s72
      %s74 = sphi 0, %s72
      %s75 = sphi 0, %s74
      %s89 = sphi 0, %s75
    $region4: #{tpu_custom_call.1} parent=1 // loop_header_branch
      %23 = sbr.rel (%p21) target = $region8
    $region5: #{tpu_custom_call.1} parent=1 // loop_body
      %s25 = ssub.s32 %s20, 1
      %s26 = ssub.s32 %s20, 2
      %s33 = sadd.s32 1, %s28
      %p34 = scmp.ge.s32.totalorder %s33, 6
      %s35 = scalar_select %p34, 0, %s33
      %s36 = sadd.s32 1, %s27
      %s37 = scalar_select %p34, %s36, %s27
      %p38 = scmp.ge.s32.totalorder %s37, 8
      %s39 = scalar_select %p38, 0, %s37
      %s40 = smul.u32 %s27, 6
      %s41 = sadd.s32 %s40, %s28
      %s42 = sld [smem:[#allocation3 + %s41]]
      %s43 = smul.u32 %s39, 6
      %s44 = sadd.s32 %s43, %s35
      %s45 = sld [smem:[#allocation3 + %s44]]
      %s46 = ssub.s32 %s42, %s45
      %p47 = scmp.eq.s32.totalorder %s46, 0
      %s49 = sadd.s32 %s48, 1
      %s50 = scalar_select %p47, %s48, %s49
      %p53 = pneg %p47
      %p54 = scmp.eq.s32.totalorder %s20, 47
      %p55 = por %p53, %p54
      %p56 = scmp.ne.s32.totalorder %s48, %s51
      %p57 = scmp.eq.s32.totalorder %s20, 0
      %p58 = por %p56, %p57
      %p59 = scmp.ne.s32.totalorder %s48, %s51
      %p60 = scmp.eq.s32.totalorder %s25, 47
      %p61 = por %p59, %p60
      %p62 = scmp.ne.s32.totalorder %s51, %s52
      %p63 = scmp.eq.s32.totalorder %s25, 0
      %p64 = por %p62, %p63
      %p65 = scmp.ne.s32.totalorder %s51, %s52
      %p66 = scmp.eq.s32.totalorder %s26, 47
      %p67 = por %p65, %p66
      %p69 = scmp.ne.s32.totalorder %s52, %s68
      %p70 = scmp.eq.s32.totalorder %s26, 0
      %p71 = por %p69, %p70
      %s73 = sadd.s32 %s72, 1
      %p76 = scmp.eq.s32.totalorder %s20, 47
      %p77 = scmp.ne.s32.totalorder %s72, %s74
      %p78 = scmp.eq.s32.totalorder %s20, 0
      %p79 = por %p77, %p78
      %p80 = scmp.ne.s32.totalorder %s72, %s74
      %p81 = scmp.eq.s32.totalorder %s25, 47
      %p82 = por %p80, %p81
      %p83 = scmp.ne.s32.totalorder %s74, %s75
      %p84 = scmp.eq.s32.totalorder %s25, 0
      %p85 = por %p83, %p84
      %p86 = scmp.ne.s32.totalorder %s74, %s75
      %p87 = scmp.eq.s32.totalorder %s26, 47
      %p88 = por %p86, %p87
      %p90 = scmp.ne.s32.totalorder %s75, %s89
      %p91 = scmp.eq.s32.totalorder %s26, 0
      %p92 = por %p90, %p91
      %p93 = scmp.le.s32.totalorder 1, %s20
      %p94 = scmp.lt.s32.totalorder %s20, 49
      %p95 = pnand %p93, %p94
      %p96 = pneg %p95
      // Predicated region
      $region9: #{tpu_custom_call.1} parent=5 // pred_check
        _
      $region10: #{tpu_custom_call.1} parent=5 // pred_check_branch
        %98 = sbr.rel (%p95) target = $region12
      $region11: #{tpu_custom_call.1} parent=5 // pred_region
        %s99 = ssub.s32 %s20, 1
      $region12: #{tpu_custom_call.1} parent=5 // pred_fallthru
        _
      %p100 = scmp.lt.s32.totalorder %s20, 48
      // Predicated region
      $region13: #{tpu_custom_call.1} parent=5 // pred_check
        %p101 = pneg %p100
      $region14: #{tpu_custom_call.1} parent=5 // pred_check_branch
        %103 = sbr.rel (%p101) target = $region16
      $region15: #{tpu_custom_call.1} parent=5 // pred_region
        // Predicated region
        $region17: #{tpu_custom_call.1} parent=15 // pred_check
          %p104 = pneg %p58
        $region18: #{tpu_custom_call.1} parent=15 // pred_check_branch
          %106 = sbr.rel (%p104) target = $region20
        $region19: #{tpu_custom_call.1} parent=15 // pred_region
          %s107 = sand.u32 %s48, 1
          %s108 = scalar_lea.sflag [#allocation5], %s107
          %s109 = sand.u32 %s48, 1
          %s110 = smul.addr %s109, 3
          %s111 = scalar_lea.vmem [#allocation4], %s110
          %s112 = smul.u32 %s27, 6
          %s113 = sadd.s32 %s112, %s28
          %s114 = sld [smem:[#allocation3 + %s113]]
          %116 = vsyncadd %s108, 0
          %s117 = smul.addr %s114, 3
          %s118 = scalar_lea.hbm %s1, %s117
          %s120 = sshll.u32 %s118, 4
          %s121 = int_to_ptr.hbm [resolvable:$true] %s120
          %s122 = sshll.u32 %s111, 4
          %s123 = int_to_ptr.vmem [resolvable:$true] %s122
          %125 = dma.hbm_to_vmem [thread:$0]  %s121, 48, %s123, %s108
        $region20: #{tpu_custom_call.1} parent=15 // pred_fallthru
          _
      $region16: #{tpu_custom_call.1} parent=5 // pred_fallthru
        _
      %p126 = scmp.le.s32.totalorder 1, %s20
      %p127 = scmp.lt.s32.totalorder %s20, 49
      %p128 = pnand %p126, %p127
      %p129 = pneg %p128
      // Predicated region
      $region21: #{tpu_custom_call.1} parent=5 // pred_check
        _
      $region22: #{tpu_custom_call.1} parent=5 // pred_check_branch
        %131 = sbr.rel (%p128) target = $region24
      $region23: #{tpu_custom_call.1} parent=5 // pred_region
        %s132 = ssub.s32 %s20, 1
        %s133 = sand.u32 %s51, 1
        %s134 = scalar_lea.sflag [#allocation5], %s133
        %s135 = sand.u32 %s51, 1
        %s136 = smul.addr %s135, 3
        %s137 = scalar_lea.vmem [#allocation4], %s136
        // Predicated region
        $region25: #{tpu_custom_call.1} parent=23 // pred_check
          %p138 = pneg %p64
        $region26: #{tpu_custom_call.1} parent=23 // pred_check_branch
          %140 = sbr.rel (%p138) target = $region28
        $region27: #{tpu_custom_call.1} parent=23 // pred_region
          %142 = dma.done %s134, 48
        $region28: #{tpu_custom_call.1} parent=23 // pred_fallthru
          _
        %s143 = sand.u32 %s51, 1
        %s144 = scalar_lea.sflag [#allocation5], %s143
        %s145 = sand.u32 %s51, 1
        %s146 = smul.addr %s145, 3
        %s147 = scalar_lea.vmem [#allocation4], %s146
        %p148 = pneg %p64
        %p149 = pneg %p61
        %p150 = pneg %p85
        %p151 = pneg %p82
        %s152 = smul.u32 %s29, 6
        %s153 = sadd.s32 %s152, %s30
        %s154 = sld [smem:[#allocation3 + %s153]]
        %p155 = scmp.eq.s32.totalorder %s29, 0
        %p156 = scmp.eq.s32.totalorder %s30, 0
        %p157 = pnand %p155, %p156
        %p158 = pneg %p157
        // Predicated region
        $region29: #{tpu_custom_call.1} parent=23 // pred_check
          _
        $region30: #{tpu_custom_call.1} parent=23 // pred_check_branch
          %160 = sbr.rel (%p157) target = $region32
        $region31: #{tpu_custom_call.1} parent=23 // pred_region
          %161 = vst [vmem:[#allocation7] sm:$0xff] 0.0
          %162 = vst [vmem:[#allocation7 + $0x8] sm:$0xff] 0.0
          %163 = vst [vmem:[#allocation7 + $0x10] sm:$0xff] 0.0
        $region32: #{tpu_custom_call.1} parent=23 // pred_fallthru
          _
        %v164 = vld [vmem:[%s137] sm:$0x7]
        %v165 = vmul.f32 %v164, %v164
        %v167 = vperm.slane %v165, 0
        %v168 = vperm.slane %v165, 1
        %v169 = vperm.slane %v165, 2
        %vm173 = vcmask 1040384
        %v174 = vsel %vm173, %v167, 0.0
        %v175 = vsel %vm173, %v168, 0.0
        %v176 = vadd.f32 %v174, %v175
        %v177 = vsel %vm173, %v169, 0.0
        %v178 = vadd.f32 %v176, %v177
        %179 = vadd.xlane.f32.xlu0 %v178
        %v180 = vpop.xlane.xlu0 %179
        %v181 = vrot.slane %v180, 4
        %v182 = vadd.f32 %v180, %v181
        %v183 = vrot.slane %v182, 2
        %v184 = vadd.f32 %v182, %v183
        %v185 = vrot.slane %v184, 1
        %v186 = vadd.f32 %v184, %v185
        %s187 = vtos %v186
        %v188 = vstv %s187
        %v189 = vrsqrt.pop %v188
        %v190 = vmul.f32 %v189, %v188
        %v191 = vmul.f32 %v190, %v189
        %v192 = vmul.f32 0.5, %v191
        %v193 = vsub.f32 1.5, %v192
        %v194 = vmul.f32 %v189, %v193
        %v195 = vmul.f32 %v188, %v194
        %vm196 = vcmp.eq.f32.partialorder %v188, inf
        %v197 = vsel %vm196, %v188, %v195
        %vm198 = vcmp.eq.f32.partialorder %v188, 0.0
        %v199 = vand.u32 %v188, 2147483648
        %v200 = vsel %vm198, %v199, %v197
        %s201 = vtos %v200
        %p202 = scmp.gt.f32.partialorder %s201, 1.0
        %s203 = sadd.f32 %s201, 1e-07
        %v204 = vstv %s203
        %v205 = vrcp.pop %v204
        %v206 = vmul.f32 %v204, %v205
        %v207 = vsub.f32 1.0, %v206
        %v208 = vmul.f32 %v205, %v207
        %v209 = vadd.f32 %v205, %v208
        %vm210 = vweird.f32 %v204
        %vm211 = vweird.f32 %v205
        %vm212 = vmor %vm210, %vm211
        %v213 = vsel %vm212, %v205, %v209
        %v214 = vand.u32 2147483647, %v204
        %vm215 = vcmp.eq.f32.partialorder %v214, 8.507059e+37
        %v216 = vand.u32 %v204, 2147483648
        %v217 = vor.u32 1.1754944e-38, %v216
        %v218 = vsel %vm215, %v217, %v213
        %s219 = vtos %v218
        %s220 = scalar_select %p202, %s219, 1.0
        %s221 = smul.f32 %s220, 0.16666667
        %v222 = vstv %s221
        %v223 = vmul.f32 %v164, %v222
        %v224 = vlaneseq
        %v225 = vshrl.u32 %v224, 7
        %v226 = vstv %s29
        %vm227 = vcmp.eq.s32.totalorder %v225, %v226
        %v228 = vsel %vm227, 1, 0
        %v229 = vcvt.s32.f32 %v228
        %v230 = vld [vmem:[#allocation7] sm:$0xff]
        %v231 = vld [vmem:[#allocation7 + $0x8] sm:$0xff]
        %v232 = vld [vmem:[#allocation7 + $0x10] sm:$0xff]
        %v234 = vperm.slane %v223, 0
        %v235 = vperm.slane %v223, 1
        %v236 = vperm.slane %v223, 2
        %v240 = vmul.f32 %v229, %v234
        %v241 = vmul.f32 %v229, %v235
        %v242 = vmul.f32 %v229, %v236
        %v243 = vadd.f32 %v230, %v240
        %v244 = vadd.f32 %v231, %v241
        %v245 = vadd.f32 %v232, %v242
        %246 = vst [vmem:[#allocation7] sm:$0xff] %v243
        %247 = vst [vmem:[#allocation7 + $0x8] sm:$0xff] %v244
        %248 = vst [vmem:[#allocation7 + $0x10] sm:$0xff] %v245
        // Predicated region
        $region33: #{tpu_custom_call.1} parent=23 // pred_check
          %p249 = pneg %p82
        $region34: #{tpu_custom_call.1} parent=23 // pred_check_branch
          %251 = sbr.rel (%p249) target = $region36
        $region35: #{tpu_custom_call.1} parent=23 // pred_region
          %253 = vsyncadd [#allocation6], 0
          %s255 = sshll.u32 [#allocation7], 4
          %s256 = int_to_ptr.vmem [resolvable:$true] %s255
          %s257 = sshll.u32 %s2, 4
          %s258 = int_to_ptr.hbm [resolvable:$true] %s257
          %260 = dma.vmem_to_hbm [thread:$0]  %s256, 384, %s258, [#allocation6]
        $region36: #{tpu_custom_call.1} parent=23 // pred_fallthru
          _
        // Predicated region
        $region37: #{tpu_custom_call.1} parent=23 // pred_check
          %p261 = pneg %p82
        $region38: #{tpu_custom_call.1} parent=23 // pred_check_branch
          %263 = sbr.rel (%p261) target = $region40
        $region39: #{tpu_custom_call.1} parent=23 // pred_region
          %265 = dma.done [#allocation6], 384
        $region40: #{tpu_custom_call.1} parent=23 // pred_fallthru
          _
      $region24: #{tpu_custom_call.1} parent=5 // pred_fallthru
        _
      %p266 = scmp.le.s32.totalorder 2, %s20
      // Predicated region
      $region41: #{tpu_custom_call.1} parent=5 // pred_check
        %p267 = pneg %p266
      $region42: #{tpu_custom_call.1} parent=5 // pred_check_branch
        %269 = sbr.rel (%p267) target = $region44
      $region43: #{tpu_custom_call.1} parent=5 // pred_region
        %s270 = ssub.s32 %s20, 2
      $region44: #{tpu_custom_call.1} parent=5 // pred_fallthru
        _
    $region6: #{tpu_custom_call.1} parent=1 // loop_footer
      %s24 = sadd.s32 1, %s20
    $region7: #{tpu_custom_call.1} parent=1 // loop_footer_branch
      %19 = sbr.rel target = $region3
    $region8: #{tpu_custom_call.1} parent=1 // loop_exit
      _
    %271 = vsyncpa [#allocation5], 1
    %s272 = scalar_lea.sflag [#allocation5], 1
    %273 = vsyncpa %s272, 1
    %274 = vsyncpa [#allocation6], 1
    %s275 = scalar_lea.sflag [#allocation6], 1
    %276 = vsyncpa %s275, 1

</llo_original>
